<compile_context>
chip_gen: v5e
topology: v5e:2x2
jax: 0.10.0
libtpu: 0.0.40
codegen_flags: <defaults>
</compile_context>

<pallas_src>
import functools

import jax
import jax.numpy as jnp
from jax.experimental import pallas as pl
from jax.experimental.pallas import tpu as pltpu


def _round_up(v, m):
    return (v + m - 1) // m * m


def _vmem_capacity_bytes():
    try:
        return int(pltpu.get_tpu_info().vmem_capacity_bytes)
    except Exception:
        return 64 << 20  # conservative (v7x per-core VMEM)


def _block_spec(shape, index_map, buffers=None):
    """BlockSpec with optional pipeline depth; falls back cleanly if the
    installed JAX does not expose pipeline_mode/Buffered."""
    if buffers is None:
        return pl.BlockSpec(shape, index_map)
    try:
        return pl.BlockSpec(shape, index_map, pipeline_mode=pl.Buffered(buffers))
    except Exception:
        return pl.BlockSpec(shape, index_map)


def _choose_tiling(num_classes, d_pad, b_pad_hint, vmem_cap, want_splits=2):
    """Pick (class_tile, n_split, tiles_per_split, c_pad) minimizing padded
    classes first, then preferring the full split count, then fewer steps."""
    c128 = _round_up(num_classes, 128)
    headroom = (16 << 20) if vmem_cap >= (96 << 20) else (12 << 20)
    budget = vmem_cap - headroom
    # Working set that does not depend on the class tile (x, x^T, step-0 Gram
    # temporaries, scratch) -- x/xt counted double-buffered to stay safe if the
    # Buffered(1) hint is unavailable.
    fixed = (2 * 2 * b_pad_hint * d_pad * 2
             + 6 * b_pad_hint * b_pad_hint * 4
             + 64 * b_pad_hint
             + (2 << 20))
    n_buf = 3
    per_col = n_buf * (2 * d_pad + 4) + 4 * b_pad_hint * 4
    avail = budget - fixed
    tc_budget = max(128, (avail // per_col) // 128 * 128) if avail > 0 else 128
    tile_target = (16 << 20) if vmem_cap >= (96 << 20) else (8 << 20)
    tc_target = max(128, (tile_target // (2 * d_pad)) // 128 * 128)
    tc_cap = int(max(128, min(tc_budget, tc_target, c128)))

    best = None
    for tc in range(128, tc_cap + 1, 128):
        n_tiles = -(-c128 // tc)
        n_split = min(want_splits, n_tiles)
        tps = -(-n_tiles // n_split)
        c_pad = n_split * tps * tc
        key = (c_pad - num_classes, n_split < want_splits, n_split * tps)
        if best is None or key < best[0]:
            best = (key, tc, n_split, tps, c_pad)
    _, tc, n_split, tps, c_pad = best
    return tc, n_split, tps, c_pad


def _pie_v2_stats_kernel(x_ref, xt_ref, wt_ref, b_ref, labc_ref, labr_ref,
                         m_out, l_out, tgt_out, trip_out,
                         m_sc, l_sc, tgt_sc, trip_sc,
                         *, margin, num_classes, batch, class_tile,
                         tiles_per_split):
    s = pl.program_id(0)           # class split (parallel across TCs on v7x)
    j = pl.program_id(1)           # class tile within split (reduction)
    n_inner = pl.num_programs(1)

    # ---------- first tile of a split: reset accumulators ----------
    @pl.when(j == 0)
    def _init():
        m_sc[...] = jnp.full_like(m_sc, -jnp.inf)
        l_sc[...] = jnp.zeros_like(l_sc)
        tgt_sc[...] = jnp.zeros_like(tgt_sc)
        trip_sc[...] = jnp.zeros_like(trip_sc)

    xb = x_ref[...]                                            # (Bp, Dp) bf16

    # ---------- triplet loss: split 0, tile 0 only ----------
    @pl.when(jnp.logical_and(s == 0, j == 0))
    def _triplet():
        # Gram matrix via pre-transposed x (no in-kernel transpose).
        gram = jnp.dot(xb, xt_ref[...],
                       preferred_element_type=jnp.float32)     # (Bp, Bp) f32
        n = gram.shape[0]
        rid = jax.lax.broadcasted_iota(jnp.int32, (n, n), 0)
        cid = jax.lax.broadcasted_iota(jnp.int32, (n, n), 1)
        diag = jnp.where(rid == cid, gram, 0.0)
        sq_col = jnp.sum(diag, axis=1, keepdims=True)          # (Bp, 1)
        sq_row = jnp.sum(diag, axis=0, keepdims=True)          # (1, Bp)
        dist = jnp.sqrt(jnp.maximum(sq_col + sq_row - 2.0 * gram, 1e-12))

        same = labc_ref[...] == labr_ref[...]                  # (Bp, Bp)
        col_valid = cid < batch
        dist_ap = jnp.max(jnp.where(same & col_valid, dist, -jnp.inf),
                          axis=1, keepdims=True)               # hard positive
        dist_an = jnp.min(jnp.where(jnp.logical_not(same) & col_valid,
                                    dist, jnp.inf),
                          axis=1, keepdims=True)               # hard negative
        per_row = jnp.maximum(dist_ap - dist_an + margin, 0.0)
        row_valid = jax.lax.broadcasted_iota(jnp.int32, per_row.shape, 0) < batch
        trip_sc[...] = jnp.where(row_valid, per_row, 0.0)

    # ---------- every tile: one class slab of the classifier ----------
    logits = jnp.dot(xb, wt_ref[...],
                     preferred_element_type=jnp.float32) + b_ref[...]  # (Bp, TC)
    tile_start = (s * tiles_per_split + j) * class_tile
    cls_ids = tile_start + jax.lax.broadcasted_iota(jnp.int32, (1, class_tile), 1)
    # Target logit (padded classes never match a real label, padded rows have
    # label -1, so no extra masking needed here).
    tgt_sc[...] += jnp.sum(jnp.where(cls_ids == labc_ref[...], logits, 0.0),
                           axis=1, keepdims=True)

    full_tile = tile_start + class_tile <= num_classes

    @pl.when(full_tile)
    def _update_unmasked():
        m_prev = m_sc[...]
        m_new = jnp.maximum(m_prev, jnp.max(logits, axis=1, keepdims=True))
        l_sc[...] = (jnp.exp(m_prev - m_new) * l_sc[...]
                     + jnp.sum(jnp.exp(logits - m_new), axis=1, keepdims=True))
        m_sc[...] = m_new

    @pl.when(jnp.logical_not(full_tile))
    def _update_masked():
        lv = jnp.where(cls_ids < num_classes, logits, -jnp.inf)
        m_prev = m_sc[...]
        m_new = jnp.maximum(m_prev, jnp.max(lv, axis=1, keepdims=True))
        l_sc[...] = (jnp.exp(m_prev - m_new) * l_sc[...]
                     + jnp.sum(jnp.exp(lv - m_new), axis=1, keepdims=True))
        m_sc[...] = m_new

    # ---------- last tile of a split: emit per-split stats ----------
    @pl.when(j == n_inner - 1)
    def _finalize():
        m_out[0] = m_sc[...]
        l_out[0] = l_sc[...]
        tgt_out[0] = tgt_sc[...]
        trip_out[0] = trip_sc[...]


def _pie_v2_loss_prepped(x, labels, wt_p, b_p, w_colsum, b_sum, *,
                         margin, eps, weight_t, weight_x, num_classes,
                         class_tile, n_split, tiles_per_split, vmem_cap):
    batch, d = x.shape
    d_pad, c_pad = wt_p.shape
    b_pad = _round_up(max(batch, 1), 16)          # bf16 sublane packing
    tc = class_tile

    x_bf = x.astype(jnp.bfloat16)
    x_p = jnp.zeros((b_pad, d_pad), jnp.bfloat16).at[:batch, :d].set(x_bf)
    xt_p = jnp.zeros((d_pad, b_pad), jnp.bfloat16).at[:d, :batch].set(x_bf.T)
    lab = jnp.full((b_pad,), -1, jnp.int32).at[:batch].set(labels.astype(jnp.int32))
    lab_col = lab.reshape(b_pad, 1)
    lab_row = lab.reshape(1, b_pad)

    kernel = functools.partial(
        _pie_v2_stats_kernel,
        margin=margin, num_classes=num_classes, batch=batch,
        class_tile=tc, tiles_per_split=tiles_per_split)

    wbuf = 3 if tiles_per_split >= 3 else 2
    in_specs = [
        _block_spec((b_pad, d_pad), lambda s, j: (0, 0), buffers=1),   # x (resident)
        _block_spec((d_pad, b_pad), lambda s, j: (0, 0), buffers=1),   # x^T (resident)
        _block_spec((d_pad, tc),                                       # W^T class tiles
                    lambda s, j: (0, s * tiles_per_split + j), buffers=wbuf),
        _block_spec((1, tc), lambda s, j: (0, s * tiles_per_split + j)),   # bias tiles
        _block_spec((b_pad, 1), lambda s, j: (0, 0)),                  # labels (col)
        _block_spec((1, b_pad), lambda s, j: (0, 0)),                  # labels (row)
    ]
    stat_shape = jax.ShapeDtypeStruct((n_split, b_pad, 1), jnp.float32)
    out_spec = pl.BlockSpec((1, b_pad, 1), lambda s, j: (s, 0, 0))

    # VMEM accounting includes the step-0 triplet temporaries; limit derived
    # from the queried capacity minus headroom (never the full capacity).
    vmem_need = (2 * 2 * b_pad * d_pad * 2
                 + 6 * b_pad * b_pad * 4
                 + wbuf * (2 * d_pad * tc + 4 * tc)
                 + 4 * b_pad * 4 * tc
                 + 64 * b_pad + (2 << 20))
    vmem_limit = int(min(vmem_cap - (8 << 20), max(vmem_need, 32 << 20)))

    cost = pl.CostEstimate(
        flops=2 * b_pad * d_pad * (b_pad + c_pad),
        transcendentals=b_pad * c_pad + 4 * b_pad,
        bytes_accessed=(2 * b_pad * d_pad * 2 + d_pad * c_pad * 2 + c_pad * 4
                        + 2 * b_pad * 4 + 4 * n_split * b_pad * 4))

    m_s, l_s, tgt_s, trip_s = pl.pallas_call(
        kernel,
        out_shape=(stat_shape, stat_shape, stat_shape, stat_shape),
        grid_spec=pltpu.PrefetchScalarGridSpec(
            num_scalar_prefetch=0,
            grid=(n_split, tiles_per_split),
            in_specs=in_specs,
            out_specs=(out_spec, out_spec, out_spec, out_spec),
            scratch_shapes=[pltpu.VMEM((b_pad, 1), jnp.float32),   # running max
                            pltpu.VMEM((b_pad, 1), jnp.float32),   # running sum-exp
                            pltpu.VMEM((b_pad, 1), jnp.float32),   # target logit
                            pltpu.VMEM((b_pad, 1), jnp.float32)]), # triplet rows
        compiler_params=pltpu.CompilerParams(
            dimension_semantics=("parallel", "arbitrary"),
            vmem_limit_bytes=vmem_limit),
        cost_estimate=cost,
    )(x_p, xt_p, wt_p, b_p, lab_col, lab_row)

    # ---------- tiny O(B) merge in plain JAX ----------
    m_s = m_s[:, :, 0]                     # (n_split, Bp)
    l_s = l_s[:, :, 0]
    tgt = jnp.sum(tgt_s[:, :, 0], axis=0)[:batch]
    m_tot = jnp.max(m_s, axis=0)
    l_tot = jnp.sum(l_s * jnp.exp(m_s - m_tot[None, :]), axis=0)
    lse = (m_tot + jnp.log(l_tot))[:batch]
    # (eps/C) * sum_c logit_{b,c} = (eps/C) * (x_b . colsum(W) + sum(b))
    sum_logits = jnp.dot(x_bf.astype(jnp.float32), w_colsum) + b_sum
    ce = jnp.sum(lse - (1.0 - eps) * tgt
                 - (eps / num_classes) * sum_logits) / batch
    trip = jnp.sum(trip_s[0, :batch, 0]) / batch
    return weight_t * trip + weight_x * ce


_JITTED_LOSS = jax.jit(
    _pie_v2_loss_prepped,
    static_argnames=("margin", "eps", "weight_t", "weight_x", "num_classes",
                     "class_tile", "n_split", "tiles_per_split", "vmem_cap"))


def make_pie_v2_loss(w, b, *, margin=0.3, eps=0.1, weight_t=1.0, weight_x=1.0,
                     batch_hint=128):
    """One-time parameter prep (hoisted out of the per-step path); returns a
    jitted loss_fn(x, labels)."""
    num_classes, d = w.shape
    d_pad = _round_up(d, 128)
    b_pad_hint = _round_up(max(batch_hint, 1), 16)
    vmem_cap = _vmem_capacity_bytes()
    tc, n_split, tps, c_pad = _choose_tiling(num_classes, d_pad, b_pad_hint, vmem_cap)

    w_bf = w.astype(jnp.bfloat16)
    wt_p = jnp.zeros((d_pad, c_pad), jnp.bfloat16).at[:d, :num_classes].set(w_bf.T)
    b_p = jnp.zeros((1, c_pad), jnp.float32).at[0, :num_classes].set(
        b.astype(jnp.float32))
    w_colsum = jnp.sum(w_bf.astype(jnp.float32), axis=0)       # (D,)
    b_sum = jnp.sum(b.astype(jnp.float32))

    def loss_fn(x, labels):
        return _JITTED_LOSS(x, labels, wt_p, b_p, w_colsum, b_sum,
                            margin=float(margin), eps=float(eps),
                            weight_t=float(weight_t), weight_x=float(weight_x),
                            num_classes=int(num_classes), class_tile=int(tc),
                            n_split=int(n_split), tiles_per_split=int(tps),
                            vmem_cap=int(vmem_cap))
    return loss_fn


def _reference_loss(x, labels, w, b, margin=0.3, eps=0.1, wt=1.0, wx=1.0):
    """Pure-JAX replica of the PyTorch forward for validation."""
    B = x.shape[0]
    C = w.shape[0]
    sq = jnp.sum(x ** 2, axis=1, keepdims=True)
    dist = jnp.sqrt(jnp.maximum(sq + sq.T - 2.0 * (x @ x.T), 1e-12))
    mask = labels[:, None] == labels[None, :]
    dist_ap = jnp.max(jnp.where(mask, dist, -jnp.inf), axis=1)
    dist_an = jnp.min(jnp.where(mask, jnp.inf, dist), axis=1)
    trip = jnp.mean(jnp.maximum(dist_ap - dist_an + margin, 0.0))
    logits = x @ w.T + b
    logp = jax.nn.log_softmax(logits, axis=1)
    onehot = jax.nn.one_hot(labels, C, dtype=jnp.float32)
    targets = (1.0 - eps) * onehot + eps / C
    ce = jnp.sum(-targets * logp) / B
    return wt * trip + wx * ce


if __name__ == "__main__":
    # Small shapes consistent with the module: x (batch, embedding_dim), labels (batch,)
    batch, embedding_dim, num_classes = 8, 32, 16
    margin, eps, weight_t, weight_x = 0.3, 0.1, 1.0, 1.0

    key = jax.random.PRNGKey(0)
    kx, kw = jax.random.split(key)
    x = jax.random.normal(kx, (batch, embedding_dim), dtype=jnp.float32)
    # Each label has >=1 positive and >=1 negative in the batch.
    labels = jnp.array([0, 0, 1, 1, 2, 2, 3, 3], dtype=jnp.int32)

    # Deterministic params matching nn.init.normal_(W, 0, 0.01), bias = 0.
    w = 0.01 * jax.random.normal(kw, (num_classes, embedding_dim), dtype=jnp.float32)
    b = jnp.zeros((num_classes,), dtype=jnp.float32)

    loss_fn = make_pie_v2_loss(w, b, margin=margin, eps=eps,
                               weight_t=weight_t, weight_x=weight_x,
                               batch_hint=batch)
    loss = jax.block_until_ready(loss_fn(x, labels))

    # Kernel consumes bf16 features/weights (f32 accumulation); validate
    # against the f32 reference evaluated on identically bf16-rounded inputs.
    xq = x.astype(jnp.bfloat16).astype(jnp.float32)
    wq = w.astype(jnp.bfloat16).astype(jnp.float32)
    ref = _reference_loss(xq, labels, wq, b, margin=margin, eps=eps,
                          wt=weight_t, wx=weight_x)
    assert jnp.isfinite(loss), "kernel produced non-finite loss"
    assert jnp.abs(loss - ref) < 2e-3, f"mismatch: kernel={loss} ref={ref}"

    print("KERNEL_OK")
</pallas_src>

<mosaic_0001>
module attributes {stable_mosaic.version = 11 : i64} {
  func.func @_pie_v2_stats_kernel(%arg0: i32, %arg1: i32, %arg2: memref<16x128xbf16, #tpu.memory_space<vmem>>, %arg3: memref<128x16xbf16, #tpu.memory_space<vmem>>, %arg4: memref<128x128xbf16, #tpu.memory_space<vmem>>, %arg5: memref<1x128xf32, #tpu.memory_space<vmem>>, %arg6: memref<16x1xi32, #tpu.memory_space<vmem>>, %arg7: memref<1x16xi32, #tpu.memory_space<vmem>>, %arg8: memref<1x16x1xf32, #tpu.memory_space<vmem>>, %arg9: memref<1x16x1xf32, #tpu.memory_space<vmem>>, %arg10: memref<1x16x1xf32, #tpu.memory_space<vmem>>, %arg11: memref<1x16x1xf32, #tpu.memory_space<vmem>>, %arg12: memref<16x1xf32, #tpu.memory_space<vmem>>, %arg13: memref<16x1xf32, #tpu.memory_space<vmem>>, %arg14: memref<16x1xf32, #tpu.memory_space<vmem>>, %arg15: memref<16x1xf32, #tpu.memory_space<vmem>>) attributes {dimension_semantics = [#tpu.dimension_semantics<parallel>, #tpu.dimension_semantics<arbitrary>], iteration_bounds = array<i64: 1, 1>, scalar_prefetch = 0 : i64, scratch_operands = 4 : i64, tpu.core_type = #tpu.core_type<tc>, window_params = [{pipeline_mode = #tpu.pipeline_mode<synchronous>, transform_indices = @transform_0, window_bounds = array<i64: 16, 128>}, {pipeline_mode = #tpu.pipeline_mode<synchronous>, transform_indices = @transform_1, window_bounds = array<i64: 128, 16>}, {pipeline_mode = #tpu.pipeline_mode<double_buffered>, transform_indices = @transform_2, window_bounds = array<i64: 128, 128>}, {transform_indices = @transform_3, window_bounds = array<i64: 1, 128>}, {pipeline_mode = #tpu.pipeline_mode<synchronous>, transform_indices = @transform_4, window_bounds = array<i64: 16, 1>}, {pipeline_mode = #tpu.pipeline_mode<synchronous>, transform_indices = @transform_5, window_bounds = array<i64: 1, 16>}, {transform_indices = @transform_6, window_bounds = array<i64: 1, 16, 1>}, {transform_indices = @transform_7, window_bounds = array<i64: 1, 16, 1>}, {transform_indices = @transform_8, window_bounds = array<i64: 1, 16, 1>}, {transform_indices = @transform_9, window_bounds = array<i64: 1, 16, 1>}]} {
    %c0_i32 = arith.constant 0 : i32
    %0 = arith.cmpi eq, %arg1, %c0_i32 : i32
    %1 = arith.extui %0 : i1 to i32
    %c0_i32_0 = arith.constant 0 : i32
    %2 = arith.cmpi ne, %1, %c0_i32_0 : i32
    scf.if %2 {
      %cst_22 = arith.constant 0xFF800000 : f32
      %41 = vector.broadcast %cst_22 : f32 to vector<16x1xf32>
      %c0_23 = arith.constant 0 : index
      %c0_24 = arith.constant 0 : index
      %42 = vector.load %arg12[%c0_23, %c0_24] : memref<16x1xf32, #tpu.memory_space<vmem>>, vector<16x1xf32>
      tpu.vector_store %arg12[%c0_23, %c0_24], %41 {strides = array<i32>} : memref<16x1xf32, #tpu.memory_space<vmem>>, vector<16x1xf32>,
      %cst_25 = arith.constant 0.000000e+00 : f32
      %43 = vector.broadcast %cst_25 : f32 to vector<16x1xf32>
      %c0_26 = arith.constant 0 : index
      %c0_27 = arith.constant 0 : index
      %44 = vector.load %arg13[%c0_26, %c0_27] : memref<16x1xf32, #tpu.memory_space<vmem>>, vector<16x1xf32>
      tpu.vector_store %arg13[%c0_26, %c0_27], %43 {strides = array<i32>} : memref<16x1xf32, #tpu.memory_space<vmem>>, vector<16x1xf32>,
      %cst_28 = arith.constant 0.000000e+00 : f32
      %45 = vector.broadcast %cst_28 : f32 to vector<16x1xf32>
      %c0_29 = arith.constant 0 : index
      %c0_30 = arith.constant 0 : index
      %46 = vector.load %arg14[%c0_29, %c0_30] : memref<16x1xf32, #tpu.memory_space<vmem>>, vector<16x1xf32>
      tpu.vector_store %arg14[%c0_29, %c0_30], %45 {strides = array<i32>} : memref<16x1xf32, #tpu.memory_space<vmem>>, vector<16x1xf32>,
      %cst_31 = arith.constant 0.000000e+00 : f32
      %47 = vector.broadcast %cst_31 : f32 to vector<16x1xf32>
      %c0_32 = arith.constant 0 : index
      %c0_33 = arith.constant 0 : index
      %48 = vector.load %arg15[%c0_32, %c0_33] : memref<16x1xf32, #tpu.memory_space<vmem>>, vector<16x1xf32>
      tpu.vector_store %arg15[%c0_32, %c0_33], %47 {strides = array<i32>} : memref<16x1xf32, #tpu.memory_space<vmem>>, vector<16x1xf32>,
    } else {
    }
    %c0 = arith.constant 0 : index
    %c0_1 = arith.constant 0 : index
    %3 = vector.load %arg2[%c0, %c0_1] : memref<16x128xbf16, #tpu.memory_space<vmem>>, vector<16x128xbf16>
    %c0_i32_2 = arith.constant 0 : i32
    %4 = arith.cmpi eq, %arg0, %c0_i32_2 : i32
    %c0_i32_3 = arith.constant 0 : i32
    %5 = arith.cmpi eq, %arg1, %c0_i32_3 : i32
    %6 = arith.andi %4, %5 : i1
    %7 = arith.extui %6 : i1 to i32
    %c0_i32_4 = arith.constant 0 : i32
    %8 = arith.cmpi ne, %7, %c0_i32_4 : i32
    scf.if %8 {
      %c0_22 = arith.constant 0 : index
      %c0_23 = arith.constant 0 : index
      %41 = vector.load %arg3[%c0_22, %c0_23] : memref<128x16xbf16, #tpu.memory_space<vmem>>, vector<128x16xbf16>
      %cst_24 = arith.constant dense<0.000000e+00> : vector<16x16xf32>
      %42 = tpu.matmul %3, %41, %cst_24 {dimension_numbers = #tpu.dot_dimension_numbers<[1], [0], [0], [1], [0, 0, 1, 1], [], []>} : vector<16x128xbf16>, vector<128x16xbf16>, vector<16x16xf32> -> vector<16x16xf32>
      %43 = tpu.iota {dimensions = array<i32: 0>} : vector<16x16xi32>
      %44 = tpu.iota {dimensions = array<i32: 1>} : vector<16x16xi32>
      %45 = arith.cmpi eq, %43, %44 : vector<16x16xi32>
      %cst_25 = arith.constant 0.000000e+00 : f32
      %46 = vector.broadcast %cst_25 : f32 to vector<16x16xf32>
      %47 = arith.select %45, %42, %46 : vector<16x16xi1>, vector<16x16xf32>
      %cst_26 = arith.constant dense<0.000000e+00> : vector<16xf32>
      %48 = vector.multi_reduction <add>, %47, %cst_26 [1] : vector<16x16xf32> to vector<16xf32>
      %49 = vector.shape_cast %48 : vector<16xf32> to vector<16x1xf32>
      %cst_27 = arith.constant dense<0.000000e+00> : vector<16xf32>
      %50 = vector.multi_reduction <add>, %47, %cst_27 [0] : vector<16x16xf32> to vector<16xf32>
      %51 = vector.shape_cast %50 : vector<16xf32> to vector<1x16xf32>
      %52 = vector.broadcast %49 : vector<16x1xf32> to vector<16x16xf32>
      %53 = vector.broadcast %51 : vector<1x16xf32> to vector<16x16xf32>
      %54 = arith.addf %52, %53 : vector<16x16xf32>
      %cst_28 = arith.constant 2.000000e+00 : f32
      %55 = vector.broadcast %cst_28 : f32 to vector<16x16xf32>
      %56 = arith.mulf %55, %42 : vector<16x16xf32>
      %57 = arith.subf %54, %56 : vector<16x16xf32>
      %cst_29 = arith.constant 9.99999996E-13 : f32
      %58 = vector.broadcast %cst_29 : f32 to vector<16x16xf32>
      %59 = arith.maximumf %57, %58 : vector<16x16xf32>
      %60 = math.sqrt %59 : vector<16x16xf32>
      %c0_30 = arith.constant 0 : index
      %c0_31 = arith.constant 0 : index
      %61 = vector.load %arg6[%c0_30, %c0_31] : memref<16x1xi32, #tpu.memory_space<vmem>>, vector<16x1xi32>
      %c0_32 = arith.constant 0 : index
      %c0_33 = arith.constant 0 : index
      %62 = vector.load %arg7[%c0_32, %c0_33] : memref<1x16xi32, #tpu.memory_space<vmem>>, vector<1x16xi32>
      %63 = vector.broadcast %61 : vector<16x1xi32> to vector<16x16xi32>
      %64 = vector.broadcast %62 : vector<1x16xi32> to vector<16x16xi32>
      %65 = arith.cmpi eq, %63, %64 : vector<16x16xi32>
      %c8_i32 = arith.constant 8 : i32
      %66 = vector.broadcast %c8_i32 : i32 to vector<16x16xi32>
      %67 = arith.cmpi slt, %44, %66 : vector<16x16xi32>
      %68 = arith.andi %65, %67 : vector<16x16xi1>
      %cst_34 = arith.constant 0xFF800000 : f32
      %69 = vector.broadcast %cst_34 : f32 to vector<16x16xf32>
      %70 = arith.select %68, %60, %69 : vector<16x16xi1>, vector<16x16xf32>
      %cst_35 = arith.constant dense<0xFF800000> : vector<16xf32>
      %71 = vector.multi_reduction <maximumf>, %70, %cst_35 [1] : vector<16x16xf32> to vector<16xf32>
      %72 = vector.shape_cast %71 : vector<16xf32> to vector<16x1xf32>
      %cst_36 = arith.constant dense<true> : vector<16x16xi1>
      %73 = arith.xori %65, %cst_36 : vector<16x16xi1>
      %74 = arith.andi %73, %67 : vector<16x16xi1>
      %cst_37 = arith.constant 0x7F800000 : f32
      %75 = vector.broadcast %cst_37 : f32 to vector<16x16xf32>
      %76 = arith.select %74, %60, %75 : vector<16x16xi1>, vector<16x16xf32>
      %cst_38 = arith.constant dense<0x7F800000> : vector<16xf32>
      %77 = vector.multi_reduction <minimumf>, %76, %cst_38 [1] : vector<16x16xf32> to vector<16xf32>
      %78 = vector.shape_cast %77 : vector<16xf32> to vector<16x1xf32>
      %79 = arith.subf %72, %78 : vector<16x1xf32>
      %cst_39 = arith.constant 3.000000e-01 : f32
      %80 = vector.broadcast %cst_39 : f32 to vector<16x1xf32>
      %81 = arith.addf %79, %80 : vector<16x1xf32>
      %cst_40 = arith.constant 0.000000e+00 : f32
      %82 = vector.broadcast %cst_40 : f32 to vector<16x1xf32>
      %83 = arith.maximumf %81, %82 : vector<16x1xf32>
      %84 = tpu.iota {dimensions = array<i32: 0>} : vector<16x1xi32>
      %c8_i32_41 = arith.constant 8 : i32
      %85 = vector.broadcast %c8_i32_41 : i32 to vector<16x1xi32>
      %86 = arith.cmpi slt, %84, %85 : vector<16x1xi32>
      %cst_42 = arith.constant 0.000000e+00 : f32
      %87 = vector.broadcast %cst_42 : f32 to vector<16x1xf32>
      %88 = arith.select %86, %83, %87 : vector<16x1xi1>, vector<16x1xf32>
      %c0_43 = arith.constant 0 : index
      %c0_44 = arith.constant 0 : index
      %89 = vector.load %arg15[%c0_43, %c0_44] : memref<16x1xf32, #tpu.memory_space<vmem>>, vector<16x1xf32>
      tpu.vector_store %arg15[%c0_43, %c0_44], %88 {strides = array<i32>} : memref<16x1xf32, #tpu.memory_space<vmem>>, vector<16x1xf32>,
    } else {
    }
    %c0_5 = arith.constant 0 : index
    %c0_6 = arith.constant 0 : index
    %9 = vector.load %arg4[%c0_5, %c0_6] : memref<128x128xbf16, #tpu.memory_space<vmem>>, vector<128x128xbf16>
    %cst = arith.constant dense<0.000000e+00> : vector<16x128xf32>
    %10 = tpu.matmul %3, %9, %cst {dimension_numbers = #tpu.dot_dimension_numbers<[1], [0], [0], [1], [0, 0, 1, 1], [], []>} : vector<16x128xbf16>, vector<128x128xbf16>, vector<16x128xf32> -> vector<16x128xf32>
    %c0_7 = arith.constant 0 : index
    %c0_8 = arith.constant 0 : index
    %11 = vector.load %arg5[%c0_7, %c0_8] : memref<1x128xf32, #tpu.memory_space<vmem>>, vector<1x128xf32>
    %12 = vector.broadcast %11 : vector<1x128xf32> to vector<16x128xf32>
    %13 = arith.addf %10, %12 : vector<16x128xf32>
    %c1_i32 = arith.constant 1 : i32
    %14 = arith.muli %arg0, %c1_i32 : i32
    %15 = arith.addi %14, %arg1 : i32
    %c128_i32 = arith.constant 128 : i32
    %16 = arith.muli %15, %c128_i32 : i32
    %17 = tpu.iota {dimensions = array<i32: 1>} : vector<1x128xi32>
    %18 = vector.broadcast %16 : i32 to vector<1x128xi32>
    %19 = arith.addi %18, %17 : vector<1x128xi32>
    %c0_9 = arith.constant 0 : index
    %c0_10 = arith.constant 0 : index
    %20 = vector.load %arg14[%c0_9, %c0_10] : memref<16x1xf32, #tpu.memory_space<vmem>>, vector<16x1xf32>
    %c0_11 = arith.constant 0 : index
    %c0_12 = arith.constant 0 : index
    %21 = vector.load %arg6[%c0_11, %c0_12] : memref<16x1xi32, #tpu.memory_space<vmem>>, vector<16x1xi32>
    %22 = vector.broadcast %19 : vector<1x128xi32> to vector<16x128xi32>
    %23 = vector.broadcast %21 : vector<16x1xi32> to vector<16x128xi32>
    %24 = arith.cmpi eq, %22, %23 : vector<16x128xi32>
    %cst_13 = arith.constant 0.000000e+00 : f32
    %25 = vector.broadcast %cst_13 : f32 to vector<16x128xf32>
    %26 = arith.select %24, %13, %25 : vector<16x128xi1>, vector<16x128xf32>
    %cst_14 = arith.constant dense<0.000000e+00> : vector<16xf32>
    %27 = vector.multi_reduction <add>, %26, %cst_14 [1] : vector<16x128xf32> to vector<16xf32>
    %28 = vector.shape_cast %27 : vector<16xf32> to vector<16x1xf32>
    %29 = arith.addf %20, %28 : vector<16x1xf32>
    %c0_15 = arith.constant 0 : index
    %c0_16 = arith.constant 0 : index
    %30 = vector.load %arg14[%c0_15, %c0_16] : memref<16x1xf32, #tpu.memory_space<vmem>>, vector<16x1xf32>
    tpu.vector_store %arg14[%c0_15, %c0_16], %29 {strides = array<i32>} : memref<16x1xf32, #tpu.memory_space<vmem>>, vector<16x1xf32>,
    %c128_i32_17 = arith.constant 128 : i32
    %31 = arith.addi %16, %c128_i32_17 : i32
    %c16_i32 = arith.constant 16 : i32
    %32 = arith.cmpi sle, %31, %c16_i32 : i32
    %33 = arith.extui %32 : i1 to i32
    %c0_i32_18 = arith.constant 0 : i32
    %34 = arith.cmpi ne, %33, %c0_i32_18 : i32
    scf.if %34 {
      %c0_22 = arith.constant 0 : index
      %c0_23 = arith.constant 0 : index
      %41 = vector.load %arg12[%c0_22, %c0_23] : memref<16x1xf32, #tpu.memory_space<vmem>>, vector<16x1xf32>
      %cst_24 = arith.constant dense<0xFF800000> : vector<16xf32>
      %42 = vector.multi_reduction <maximumf>, %13, %cst_24 [1] : vector<16x128xf32> to vector<16xf32>
      %43 = vector.shape_cast %42 : vector<16xf32> to vector<16x1xf32>
      %44 = arith.maximumf %41, %43 : vector<16x1xf32>
      %45 = arith.subf %41, %44 : vector<16x1xf32>
      %46 = math.exp %45 : vector<16x1xf32>
      %c0_25 = arith.constant 0 : index
      %c0_26 = arith.constant 0 : index
      %47 = vector.load %arg13[%c0_25, %c0_26] : memref<16x1xf32, #tpu.memory_space<vmem>>, vector<16x1xf32>
      %48 = arith.mulf %46, %47 : vector<16x1xf32>
      %49 = vector.broadcast %44 : vector<16x1xf32> to vector<16x128xf32>
      %50 = arith.subf %13, %49 : vector<16x128xf32>
      %51 = math.exp %50 : vector<16x128xf32>
      %cst_27 = arith.constant dense<0.000000e+00> : vector<16xf32>
      %52 = vector.multi_reduction <add>, %51, %cst_27 [1] : vector<16x128xf32> to vector<16xf32>
      %53 = vector.shape_cast %52 : vector<16xf32> to vector<16x1xf32>
      %54 = arith.addf %48, %53 : vector<16x1xf32>
      %c0_28 = arith.constant 0 : index
      %c0_29 = arith.constant 0 : index
      %55 = vector.load %arg13[%c0_28, %c0_29] : memref<16x1xf32, #tpu.memory_space<vmem>>, vector<16x1xf32>
      tpu.vector_store %arg13[%c0_28, %c0_29], %54 {strides = array<i32>} : memref<16x1xf32, #tpu.memory_space<vmem>>, vector<16x1xf32>,
      %c0_30 = arith.constant 0 : index
      %c0_31 = arith.constant 0 : index
      %56 = vector.load %arg12[%c0_30, %c0_31] : memref<16x1xf32, #tpu.memory_space<vmem>>, vector<16x1xf32>
      tpu.vector_store %arg12[%c0_30, %c0_31], %44 {strides = array<i32>} : memref<16x1xf32, #tpu.memory_space<vmem>>, vector<16x1xf32>,
    } else {
    }
    %true = arith.constant true
    %35 = arith.xori %32, %true : i1
    %36 = arith.extui %35 : i1 to i32
    %c0_i32_19 = arith.constant 0 : i32
    %37 = arith.cmpi ne, %36, %c0_i32_19 : i32
    scf.if %37 {
      %c16_i32_22 = arith.constant 16 : i32
      %41 = vector.broadcast %c16_i32_22 : i32 to vector<1x128xi32>
      %42 = arith.cmpi slt, %19, %41 : vector<1x128xi32>
      %cst_23 = arith.constant 0xFF800000 : f32
      %43 = vector.shape_cast %42 : vector<1x128xi1> to vector<1x128xi1>
      %44 = vector.broadcast %43 : vector<1x128xi1> to vector<16x128xi1>
      %45 = vector.broadcast %cst_23 : f32 to vector<16x128xf32>
      %46 = arith.select %44, %13, %45 : vector<16x128xi1>, vector<16x128xf32>
      %c0_24 = arith.constant 0 : index
      %c0_25 = arith.constant 0 : index
      %47 = vector.load %arg12[%c0_24, %c0_25] : memref<16x1xf32, #tpu.memory_space<vmem>>, vector<16x1xf32>
      %cst_26 = arith.constant dense<0xFF800000> : vector<16xf32>
      %48 = vector.multi_reduction <maximumf>, %46, %cst_26 [1] : vector<16x128xf32> to vector<16xf32>
      %49 = vector.shape_cast %48 : vector<16xf32> to vector<16x1xf32>
      %50 = arith.maximumf %47, %49 : vector<16x1xf32>
      %51 = arith.subf %47, %50 : vector<16x1xf32>
      %52 = math.exp %51 : vector<16x1xf32>
      %c0_27 = arith.constant 0 : index
      %c0_28 = arith.constant 0 : index
      %53 = vector.load %arg13[%c0_27, %c0_28] : memref<16x1xf32, #tpu.memory_space<vmem>>, vector<16x1xf32>
      %54 = arith.mulf %52, %53 : vector<16x1xf32>
      %55 = vector.broadcast %50 : vector<16x1xf32> to vector<16x128xf32>
      %56 = arith.subf %46, %55 : vector<16x128xf32>
      %57 = math.exp %56 : vector<16x128xf32>
      %cst_29 = arith.constant dense<0.000000e+00> : vector<16xf32>
      %58 = vector.multi_reduction <add>, %57, %cst_29 [1] : vector<16x128xf32> to vector<16xf32>
      %59 = vector.shape_cast %58 : vector<16xf32> to vector<16x1xf32>
      %60 = arith.addf %54, %59 : vector<16x1xf32>
      %c0_30 = arith.constant 0 : index
      %c0_31 = arith.constant 0 : index
      %61 = vector.load %arg13[%c0_30, %c0_31] : memref<16x1xf32, #tpu.memory_space<vmem>>, vector<16x1xf32>
      tpu.vector_store %arg13[%c0_30, %c0_31], %60 {strides = array<i32>} : memref<16x1xf32, #tpu.memory_space<vmem>>, vector<16x1xf32>,
      %c0_32 = arith.constant 0 : index
      %c0_33 = arith.constant 0 : index
      %62 = vector.load %arg12[%c0_32, %c0_33] : memref<16x1xf32, #tpu.memory_space<vmem>>, vector<16x1xf32>
      tpu.vector_store %arg12[%c0_32, %c0_33], %50 {strides = array<i32>} : memref<16x1xf32, #tpu.memory_space<vmem>>, vector<16x1xf32>,
    } else {
    }
    %c0_i32_20 = arith.constant 0 : i32
    %38 = arith.cmpi eq, %arg1, %c0_i32_20 : i32
    %39 = arith.extui %38 : i1 to i32
    %c0_i32_21 = arith.constant 0 : i32
    %40 = arith.cmpi ne, %39, %c0_i32_21 : i32
    scf.if %40 {
      %c0_22 = arith.constant 0 : index
      %c0_23 = arith.constant 0 : index
      %41 = vector.load %arg12[%c0_22, %c0_23] : memref<16x1xf32, #tpu.memory_space<vmem>>, vector<16x1xf32>
      %c0_24 = arith.constant 0 : index
      %c0_25 = arith.constant 0 : index
      %c0_26 = arith.constant 0 : index
      %42 = vector.load %arg8[%c0_24, %c0_25, %c0_26] : memref<1x16x1xf32, #tpu.memory_space<vmem>>, vector<1x16x1xf32>
      %43 = vector.shape_cast %42 : vector<1x16x1xf32> to vector<16x1xf32>
      %44 = vector.shape_cast %41 : vector<16x1xf32> to vector<1x16x1xf32>
      tpu.vector_store %arg8[%c0_24, %c0_25, %c0_26], %44 {strides = array<i32>} : memref<1x16x1xf32, #tpu.memory_space<vmem>>, vector<1x16x1xf32>,
      %c0_27 = arith.constant 0 : index
      %c0_28 = arith.constant 0 : index
      %45 = vector.load %arg13[%c0_27, %c0_28] : memref<16x1xf32, #tpu.memory_space<vmem>>, vector<16x1xf32>
      %c0_29 = arith.constant 0 : index
      %c0_30 = arith.constant 0 : index
      %c0_31 = arith.constant 0 : index
      %46 = vector.load %arg9[%c0_29, %c0_30, %c0_31] : memref<1x16x1xf32, #tpu.memory_space<vmem>>, vector<1x16x1xf32>
      %47 = vector.shape_cast %46 : vector<1x16x1xf32> to vector<16x1xf32>
      %48 = vector.shape_cast %45 : vector<16x1xf32> to vector<1x16x1xf32>
      tpu.vector_store %arg9[%c0_29, %c0_30, %c0_31], %48 {strides = array<i32>} : memref<1x16x1xf32, #tpu.memory_space<vmem>>, vector<1x16x1xf32>,
      %c0_32 = arith.constant 0 : index
      %c0_33 = arith.constant 0 : index
      %49 = vector.load %arg14[%c0_32, %c0_33] : memref<16x1xf32, #tpu.memory_space<vmem>>, vector<16x1xf32>
      %c0_34 = arith.constant 0 : index
      %c0_35 = arith.constant 0 : index
      %c0_36 = arith.constant 0 : index
      %50 = vector.load %arg10[%c0_34, %c0_35, %c0_36] : memref<1x16x1xf32, #tpu.memory_space<vmem>>, vector<1x16x1xf32>
      %51 = vector.shape_cast %50 : vector<1x16x1xf32> to vector<16x1xf32>
      %52 = vector.shape_cast %49 : vector<16x1xf32> to vector<1x16x1xf32>
      tpu.vector_store %arg10[%c0_34, %c0_35, %c0_36], %52 {strides = array<i32>} : memref<1x16x1xf32, #tpu.memory_space<vmem>>, vector<1x16x1xf32>,
      %c0_37 = arith.constant 0 : index
      %c0_38 = arith.constant 0 : index
      %53 = vector.load %arg15[%c0_37, %c0_38] : memref<16x1xf32, #tpu.memory_space<vmem>>, vector<16x1xf32>
      %c0_39 = arith.constant 0 : index
      %c0_40 = arith.constant 0 : index
      %c0_41 = arith.constant 0 : index
      %54 = vector.load %arg11[%c0_39, %c0_40, %c0_41] : memref<1x16x1xf32, #tpu.memory_space<vmem>>, vector<1x16x1xf32>
      %55 = vector.shape_cast %54 : vector<1x16x1xf32> to vector<16x1xf32>
      %56 = vector.shape_cast %53 : vector<16x1xf32> to vector<1x16x1xf32>
      tpu.vector_store %arg11[%c0_39, %c0_40, %c0_41], %56 {strides = array<i32>} : memref<1x16x1xf32, #tpu.memory_space<vmem>>, vector<1x16x1xf32>,
    } else {
    }
    return
  }
  func.func @transform_0(%arg0: i32, %arg1: i32) -> (i32, i32) {
    %c0_i32 = arith.constant 0 : i32
    %c0_i32_0 = arith.constant 0 : i32
    %c0_i32_1 = arith.constant 0 : i32
    return %c0_i32, %c0_i32_0 : i32, i32
  }
  func.func @transform_1(%arg0: i32, %arg1: i32) -> (i32, i32) {
    %c0_i32 = arith.constant 0 : i32
    %c0_i32_0 = arith.constant 0 : i32
    %c0_i32_1 = arith.constant 0 : i32
    return %c0_i32, %c0_i32_0 : i32, i32
  }
  func.func @transform_2(%arg0: i32, %arg1: i32) -> (i32, i32) {
    %c1_i32 = arith.constant 1 : i32
    %0 = arith.muli %arg0, %c1_i32 : i32
    %1 = arith.addi %0, %arg1 : i32
    %c0_i32 = arith.constant 0 : i32
    %c0_i32_0 = arith.constant 0 : i32
    return %c0_i32, %1 : i32, i32
  }
  func.func @transform_3(%arg0: i32, %arg1: i32) -> (i32, i32) {
    %c1_i32 = arith.constant 1 : i32
    %0 = arith.muli %arg0, %c1_i32 : i32
    %1 = arith.addi %0, %arg1 : i32
    %c0_i32 = arith.constant 0 : i32
    %c0_i32_0 = arith.constant 0 : i32
    return %c0_i32, %1 : i32, i32
  }
  func.func @transform_4(%arg0: i32, %arg1: i32) -> (i32, i32) {
    %c0_i32 = arith.constant 0 : i32
    %c0_i32_0 = arith.constant 0 : i32
    %c0_i32_1 = arith.constant 0 : i32
    return %c0_i32, %c0_i32_0 : i32, i32
  }
  func.func @transform_5(%arg0: i32, %arg1: i32) -> (i32, i32) {
    %c0_i32 = arith.constant 0 : i32
    %c0_i32_0 = arith.constant 0 : i32
    %c0_i32_1 = arith.constant 0 : i32
    return %c0_i32, %c0_i32_0 : i32, i32
  }
  func.func @transform_6(%arg0: i32, %arg1: i32) -> (i32, i32, i32) {
    %c0_i32 = arith.constant 0 : i32
    %c0_i32_0 = arith.constant 0 : i32
    %c0_i32_1 = arith.constant 0 : i32
    return %arg0, %c0_i32, %c0_i32_0 : i32, i32, i32
  }
  func.func @transform_7(%arg0: i32, %arg1: i32) -> (i32, i32, i32) {
    %c0_i32 = arith.constant 0 : i32
    %c0_i32_0 = arith.constant 0 : i32
    %c0_i32_1 = arith.constant 0 : i32
    return %arg0, %c0_i32, %c0_i32_0 : i32, i32, i32
  }
  func.func @transform_8(%arg0: i32, %arg1: i32) -> (i32, i32, i32) {
    %c0_i32 = arith.constant 0 : i32
    %c0_i32_0 = arith.constant 0 : i32
    %c0_i32_1 = arith.constant 0 : i32
    return %arg0, %c0_i32, %c0_i32_0 : i32, i32, i32
  }
  func.func @transform_9(%arg0: i32, %arg1: i32) -> (i32, i32, i32) {
    %c0_i32 = arith.constant 0 : i32
    %c0_i32_0 = arith.constant 0 : i32
    %c0_i32_1 = arith.constant 0 : i32
    return %arg0, %c0_i32, %c0_i32_0 : i32, i32, i32
  }
}

</mosaic_0001>

<llo_original>
// kernel: _pie_v2_loss_prepped.1
$region0: #{_pie_v2_loss_prepped.1}
  #allocation0 [shape = 'u32[]', space=smem, size = 0x4, offset = 0x4, fixed_abs, tag = 'smem constant byte address 0x4 - core index']
  #allocation1 [shape = 'u32[72,128]{1,0:T(1,128)}', space=vmem, size = 0x9000, scoped, tag = 'internal scratch']
  #allocation2 [shape = 'f32[16,1]{1,0:T(8,128)}', space=vmem, size = 0x2000, scoped, tag = 'scratch operand']
  #allocation3 [shape = 'f32[16,1]{1,0:T(8,128)}', space=vmem, size = 0x2000, scoped, tag = 'scratch operand']
  #allocation4 [shape = 'f32[16,1]{1,0:T(8,128)}', space=vmem, size = 0x2000, scoped, tag = 'scratch operand']
  #allocation5 [shape = 'f32[16,1]{1,0:T(8,128)}', space=vmem, size = 0x2000, scoped, tag = 'scratch operand']
  %s0 = inlined_call_operand.vmem [shape: bf16[16,128], index: 0, kind: input, shape index: {}]
  %s1 = inlined_call_operand.vmem [shape: bf16[128,16], index: 1, kind: input, shape index: {}]
  %s2 = inlined_call_operand.vmem [shape: bf16[128,128], index: 2, kind: input, shape index: {}]
  %s3 = inlined_call_operand.vmem [shape: f32[1,128], index: 3, kind: input, shape index: {}]
  %s4 = inlined_call_operand.vmem [shape: s32[16,1], index: 4, kind: input, shape index: {}]
  %s5 = inlined_call_operand.vmem [shape: s32[1,16], index: 5, kind: input, shape index: {}]
  %s6 = inlined_call_operand.vmem [shape: f32[1,16,1], index: 6, kind: output, shape index: {0}]
  %s7 = inlined_call_operand.vmem [shape: f32[1,16,1], index: 7, kind: output, shape index: {1}]
  %s8 = inlined_call_operand.vmem [shape: f32[1,16,1], index: 8, kind: output, shape index: {2}]
  %s9 = inlined_call_operand.vmem [shape: f32[1,16,1], index: 9, kind: output, shape index: {3}]
  %10 = xla_tuple %s6, %s7, %s8, %s9
  %s11 = sld [smem:[#allocation0]]
  $region78: #{_pie_v2_loss_prepped.1} parent=0
    _
  %s13 = ssub.s32 1, %s11
  %s14 = scalar_select 0, %s13, %s11
  // Predicated region
  $region2: #{_pie_v2_loss_prepped.1} parent=0 // pred_check
    _
  $region3: #{_pie_v2_loss_prepped.1} parent=0 // pred_check_branch
    %16 = sbr.rel (0) target = $region5
  $region4: #{_pie_v2_loss_prepped.1} parent=0 // pred_region
    _
  $region5: #{_pie_v2_loss_prepped.1} parent=0 // pred_fallthru
    _
  // Predicated region
  $region6: #{_pie_v2_loss_prepped.1} parent=0 // pred_check
    _
  $region7: #{_pie_v2_loss_prepped.1} parent=0 // pred_check_branch
    %18 = sbr.rel (0) target = $region9
  $region8: #{_pie_v2_loss_prepped.1} parent=0 // pred_region
    _
  $region9: #{_pie_v2_loss_prepped.1} parent=0 // pred_fallthru
    _
  // Predicated region
  $region10: #{_pie_v2_loss_prepped.1} parent=0 // pred_check
    _
  $region11: #{_pie_v2_loss_prepped.1} parent=0 // pred_check_branch
    %20 = sbr.rel (0) target = $region13
  $region12: #{_pie_v2_loss_prepped.1} parent=0 // pred_region
    %s21 = sadd.s32 0, 0
    %p22 = scmp.lt.s32.totalorder %s21, 0
    %s23 = scalar_select %p22, %s21, 0
    %s24 = smul.addr %s23, 4
    %s25 = scalar_lea.vmem %s2, %s24
    %s26 = sadd.s32 0, 0
  $region13: #{_pie_v2_loss_prepped.1} parent=0 // pred_fallthru
    _
  // Predicated region
  $region14: #{_pie_v2_loss_prepped.1} parent=0 // pred_check
    _
  $region15: #{_pie_v2_loss_prepped.1} parent=0 // pred_check_branch
    %28 = sbr.rel (0) target = $region17
  $region16: #{_pie_v2_loss_prepped.1} parent=0 // pred_region
    %s29 = sadd.s32 0, 0
    %p30 = scmp.lt.s32.totalorder %s29, 0
    %s31 = scalar_select %p30, %s29, 0
    %s32 = scalar_lea.vmem %s3, %s31
    %s33 = sadd.s32 0, 0
  $region17: #{_pie_v2_loss_prepped.1} parent=0 // pred_fallthru
    _
  // Predicated region
  $region18: #{_pie_v2_loss_prepped.1} parent=0 // pred_check
    _
  $region19: #{_pie_v2_loss_prepped.1} parent=0 // pred_check_branch
    %35 = sbr.rel (0) target = $region21
  $region20: #{_pie_v2_loss_prepped.1} parent=0 // pred_region
    _
  $region21: #{_pie_v2_loss_prepped.1} parent=0 // pred_fallthru
    _
  // Predicated region
  $region22: #{_pie_v2_loss_prepped.1} parent=0 // pred_check
    _
  $region23: #{_pie_v2_loss_prepped.1} parent=0 // pred_check_branch
    %37 = sbr.rel (0) target = $region25
  $region24: #{_pie_v2_loss_prepped.1} parent=0 // pred_region
    _
  $region25: #{_pie_v2_loss_prepped.1} parent=0 // pred_fallthru
    _
  %s38 = sadd.s32 0, 0
  %p39 = scmp.lt.s32.totalorder %s38, 0
  %s40 = scalar_select %p39, %s38, 0
  %s41 = smul.addr %s40, 4
  %s42 = scalar_lea.vmem %s2, %s41
  %s43 = sadd.s32 0, 0
  %p44 = scmp.lt.s32.totalorder %s43, 0
  %s45 = scalar_select %p44, %s43, 0
  %s46 = scalar_lea.vmem %s3, %s45
  %s47 = sadd.s32 0, 0
  %p48 = scmp.lt.s32.totalorder %s47, 0
  %s49 = scalar_select %p48, %s47, 0
  %s50 = smul.addr %s49, 4
  %s51 = scalar_lea.vmem %s2, %s50
  %s52 = sadd.s32 0, 0
  %s53 = sadd.s32 0, 0
  %p54 = scmp.lt.s32.totalorder %s53, 0
  %s55 = scalar_select %p54, %s53, 0
  %s56 = scalar_lea.vmem %s3, %s55
  %s57 = sadd.s32 0, 0
  %p58 = scmp.eq.s32.totalorder 0, 0
  // Predicated region
  $region26: #{_pie_v2_loss_prepped.1} parent=0 // pred_check
    %p59 = pneg %p58
  $region27: #{_pie_v2_loss_prepped.1} parent=0 // pred_check_branch
    %61 = sbr.rel (%p59) target = $region29
  $region28: #{_pie_v2_loss_prepped.1} parent=0 // pred_region
    %vm62 = vcmask 7168
    %63 = vst.msk [vmem:[#allocation2] sm:$0xff] %vm62, -inf
    %64 = vst.msk [vmem:[#allocation2 + $0x8] sm:$0xff] %vm62, -inf
    %65 = vst.msk [vmem:[#allocation3] sm:$0xff] %vm62, 0.0
    %66 = vst.msk [vmem:[#allocation3 + $0x8] sm:$0xff] %vm62, 0.0
    %67 = vst.msk [vmem:[#allocation4] sm:$0xff] %vm62, 0.0
    %68 = vst.msk [vmem:[#allocation4 + $0x8] sm:$0xff] %vm62, 0.0
    %69 = vst.msk [vmem:[#allocation5] sm:$0xff] %vm62, 0.0
    %70 = vst.msk [vmem:[#allocation5 + $0x8] sm:$0xff] %vm62, 0.0
  $region29: #{_pie_v2_loss_prepped.1} parent=0 // pred_fallthru
    _
  %v71 = vld [vmem:[%s0] sm:$0xf]
  %v72 = vld [vmem:[%s0 + $0x4] sm:$0xf]
  %p73 = scmp.eq.s32.totalorder 0, 0
  %p74 = pnand %p73, %p58
  %p75 = pneg %p74
  // Predicated region
  $region30: #{_pie_v2_loss_prepped.1} parent=0 // pred_check
    _
  $region31: #{_pie_v2_loss_prepped.1} parent=0 // pred_check_branch
    %77 = sbr.rel (%p74) target = $region33
  $region32: #{_pie_v2_loss_prepped.1} parent=0 // pred_region
    %v78 = vld [vmem:[%s1] sm:$0xf]
    %v79 = vld [vmem:[%s1 + $0x4] sm:$0xf]
    %v80 = vld [vmem:[%s1 + $0x8] sm:$0xf]
    %v81 = vld [vmem:[%s1 + $0xc] sm:$0xf]
    %v82 = vld [vmem:[%s1 + $0x10] sm:$0xf]
    %v83 = vld [vmem:[%s1 + $0x14] sm:$0xf]
    %v84 = vld [vmem:[%s1 + $0x18] sm:$0xf]
    %v85 = vld [vmem:[%s1 + $0x1c] sm:$0xf]
    %v86 = vld [vmem:[%s1 + $0x20] sm:$0xf]
    %v87 = vld [vmem:[%s1 + $0x24] sm:$0xf]
    %v88 = vld [vmem:[%s1 + $0x28] sm:$0xf]
    %v89 = vld [vmem:[%s1 + $0x2c] sm:$0xf]
    %v90 = vld [vmem:[%s1 + $0x30] sm:$0xf]
    %v91 = vld [vmem:[%s1 + $0x34] sm:$0xf]
    %v92 = vld [vmem:[%s1 + $0x38] sm:$0xf]
    %v93 = vld [vmem:[%s1 + $0x3c] sm:$0xf]
    %v96 = vunpack.c.l.b16 %v71
    %v97 = vunpack.c.l.b16 %v72
    %v98 = vpack.c.b16 %v97, %v96
    %v116 = vunpack.c.l.b16 %v78
    %v117 = vunpack.c.l.b16 %v79
    %v118 = vunpack.c.l.b16 %v80
    %v119 = vunpack.c.l.b16 %v81
    %v120 = vunpack.c.l.b16 %v82
    %v121 = vunpack.c.l.b16 %v83
    %v122 = vunpack.c.l.b16 %v84
    %v123 = vunpack.c.l.b16 %v85
    %v124 = vunpack.c.l.b16 %v86
    %v125 = vunpack.c.l.b16 %v87
    %v126 = vunpack.c.l.b16 %v88
    %v127 = vunpack.c.l.b16 %v89
    %v128 = vunpack.c.l.b16 %v90
    %v129 = vunpack.c.l.b16 %v91
    %v130 = vunpack.c.l.b16 %v92
    %v131 = vunpack.c.l.b16 %v93
    %v132 = vpack.c.b16 %v117, %v116
    %v133 = vpack.c.b16 %v119, %v118
    %v134 = vpack.c.b16 %v121, %v120
    %v135 = vpack.c.b16 %v123, %v122
    %v136 = vpack.c.b16 %v125, %v124
    %v137 = vpack.c.b16 %v127, %v126
    %v138 = vpack.c.b16 %v129, %v128
    %v139 = vpack.c.b16 %v131, %v130
    %148 = vmatpush.bf16.msra.mxu0 %v139
    %149 = vmatpush.bf16.msra.mxu0 %v138
    %150 = vmatpush.bf16.msra.mxu0 %v137
    %151 = vmatpush.bf16.msra.mxu0 %v136
    %152 = vmatpush.bf16.msra.mxu0 %v135
    %153 = vmatpush.bf16.msra.mxu0 %v134
    %154 = vmatpush.bf16.msra.mxu0 %v133
    %155 = vmatpush.bf16.msra.mxu0 %v132
    %156 = vmatmul.bf16.gmra.mxu0 %v98
    %v157 = vpop.f32.mrf.mxu0
    %v158 = vadd.f32 0.0, %v157
    %v159 = vpop.f32.mrf.mxu0
    %v160 = vadd.f32 0.0, %v159
    %161 = vdwg.mxu0
    %v162 = vlaneseq
    %v163 = vshrl.u32 %v162, 7
    %v164 = vadd.s32 %v163, 8
    %v165 = vlaneseq
    %v166 = vand.u32 %v165, 127
    %vm167 = vcmp.eq.s32.totalorder %v163, %v166
    %vm168 = vcmp.eq.s32.totalorder %v164, %v166
    %v169 = vsel %vm167, %v158, 0.0
    %v170 = vsel %vm168, %v160, 0.0
    %vm171 = vcmask 130048
    %v172 = vsel %vm171, %v169, 0.0
    %173 = vadd.xlane.f32.xlu0 %v172
    %v174 = vpop.xlane.xlu0 %173
    %v175 = vsel %vm171, %v170, 0.0
    %176 = vadd.xlane.f32.xlu0 %v175
    %v177 = vpop.xlane.xlu0 %176
    %v178 = vadd.f32 %v172, %v175
    %v179 = vrot.slane %v178, 4
    %v180 = vadd.f32 %v178, %v179
    %v181 = vrot.slane %v180, 2
    %v182 = vadd.f32 %v180, %v181
    %v183 = vrot.slane %v182, 1
    %v184 = vadd.f32 %v182, %v183
    %v185 = vadd.f32 %v174, %v184
    %v186 = vadd.f32 %v177, %v184
    %v187 = vmul.f32 %v158, 2.0
    %v188 = vmul.f32 %v160, 2.0
    %v189 = vsub.f32 %v185, %v187
    %v190 = vsub.f32 %v186, %v188
    %v191 = vmax.f32 %v189, 1e-12
    %v192 = vmax.f32 %v190, 1e-12
    %v193 = vrsqrt.pop %v191
    %v194 = vmul.f32 %v193, %v191
    %v195 = vmul.f32 %v194, %v193
    %v196 = vmul.f32 0.5, %v195
    %v197 = vsub.f32 1.5, %v196
    %v198 = vmul.f32 %v193, %v197
    %v199 = vmul.f32 %v191, %v198
    %vm200 = vcmp.eq.f32.partialorder %v191, inf
    %v201 = vsel %vm200, %v191, %v199
    %vm202 = vcmp.eq.f32.partialorder %v191, 0.0
    %v203 = vand.u32 %v191, 2147483648
    %v204 = vsel %vm202, %v203, %v201
    %v205 = vrsqrt.pop %v192
    %v206 = vmul.f32 %v205, %v192
    %v207 = vmul.f32 %v206, %v205
    %v208 = vmul.f32 0.5, %v207
    %v209 = vsub.f32 1.5, %v208
    %v210 = vmul.f32 %v205, %v209
    %v211 = vmul.f32 %v192, %v210
    %vm212 = vcmp.eq.f32.partialorder %v192, inf
    %v213 = vsel %vm212, %v192, %v211
    %vm214 = vcmp.eq.f32.partialorder %v192, 0.0
    %v215 = vand.u32 %v192, 2147483648
    %v216 = vsel %vm214, %v215, %v213
    %v217 = vld [vmem:[%s4] sm:$0xff]
    %v218 = vld [vmem:[%s4 + $0x8] sm:$0xff]
    %v219 = vld [vmem:[%s5] sm:$0x1]
    %220 = vset.pattern.permute.xlu0 0
    %221 = vperm.xlu0 %220, %v217
    %v222 = vpop.permute.xlu0 %221
    %223 = vset.pattern.permute.xlu0 0
    %224 = vperm.xlu0 %223, %v218
    %v225 = vpop.permute.xlu0 %224
    %v226 = vperm.slane %v219, 0
    %vm227 = vcmp.eq.s32.totalorder %v222, %v226
    %vm228 = vcmp.eq.s32.totalorder %v225, %v226
    %vm229 = vcmp.lt.s32.totalorder %v166, 8
    %vm230 = vmand %vm227, %vm229
    %vm231 = vmand %vm228, %vm229
    %v232 = vsel %vm230, %v204, -inf
    %v233 = vsel %vm231, %v216, -inf
    %v234 = vsel %vm171, %v232, -inf
    %235 = vmax.xlane.f32.xlu0 %v234
    %v236 = vpop.xlane.xlu0 %235
    %v237 = vsel %vm171, %v233, -inf
    %238 = vmax.xlane.f32.xlu0 %v237
    %v239 = vpop.xlane.xlu0 %238
    %vm240 = vmxor %vm227, 1
    %vm241 = vmxor %vm228, 1
    %vm242 = vmand %vm240, %vm229
    %vm243 = vmand %vm241, %vm229
    %v244 = vsel %vm242, %v204, inf
    %v245 = vsel %vm243, %v216, inf
    %v246 = vsel %vm171, %v244, inf
    %247 = vmin.xlane.f32.xlu0 %v246
    %v248 = vpop.xlane.xlu0 %247
    %v249 = vsel %vm171, %v245, inf
    %250 = vmin.xlane.f32.xlu0 %v249
    %v251 = vpop.xlane.xlu0 %250
    %v252 = vsub.f32 %v236, %v248
    %v253 = vsub.f32 %v239, %v251
    %v254 = vadd.f32 %v252, 0.3
    %v255 = vadd.f32 %v253, 0.3
    %v256 = vmax.f32 %v254, 0.0
    %v257 = vmax.f32 %v255, 0.0
    %vm258 = vcmp.lt.s32.totalorder %v163, 8
    %vm259 = vcmp.lt.s32.totalorder %v164, 8
    %v260 = vsel %vm258, %v256, 0.0
    %v261 = vsel %vm259, %v257, 0.0
    %vm262 = vcmask 7168
    %263 = vst.msk [vmem:[#allocation5] sm:$0xff] %vm262, %v260
    %264 = vst.msk [vmem:[#allocation5 + $0x8] sm:$0xff] %vm262, %v261
  $region33: #{_pie_v2_loss_prepped.1} parent=0 // pred_fallthru
    _
  %v265 = vld [vmem:[%s51] sm:$0xf]
  %v266 = vld [vmem:[%s51 + $0x4] sm:$0xf]
  %v267 = vld [vmem:[%s51 + $0x8] sm:$0xf]
  %v268 = vld [vmem:[%s51 + $0xc] sm:$0xf]
  %v269 = vld [vmem:[%s51 + $0x10] sm:$0xf]
  %v270 = vld [vmem:[%s51 + $0x14] sm:$0xf]
  %v271 = vld [vmem:[%s51 + $0x18] sm:$0xf]
  %v272 = vld [vmem:[%s51 + $0x1c] sm:$0xf]
  %v273 = vld [vmem:[%s51 + $0x20] sm:$0xf]
  %v274 = vld [vmem:[%s51 + $0x24] sm:$0xf]
  %v275 = vld [vmem:[%s51 + $0x28] sm:$0xf]
  %v276 = vld [vmem:[%s51 + $0x2c] sm:$0xf]
  %v277 = vld [vmem:[%s51 + $0x30] sm:$0xf]
  %v278 = vld [vmem:[%s51 + $0x34] sm:$0xf]
  %v279 = vld [vmem:[%s51 + $0x38] sm:$0xf]
  %v280 = vld [vmem:[%s51 + $0x3c] sm:$0xf]
  %v281 = vld [vmem:[%s56] sm:$0x1]
  %v283 = vperm.slane %v281, 0
  %v287 = vunpack.c.l.b16 %v71
  %v288 = vunpack.c.l.b16 %v72
  %v289 = vpack.c.b16 %v288, %v287
  %v307 = vunpack.c.l.b16 %v265
  %v308 = vunpack.c.l.b16 %v266
  %v309 = vunpack.c.l.b16 %v267
  %v310 = vunpack.c.l.b16 %v268
  %v311 = vunpack.c.l.b16 %v269
  %v312 = vunpack.c.l.b16 %v270
  %v313 = vunpack.c.l.b16 %v271
  %v314 = vunpack.c.l.b16 %v272
  %v315 = vunpack.c.l.b16 %v273
  %v316 = vunpack.c.l.b16 %v274
  %v317 = vunpack.c.l.b16 %v275
  %v318 = vunpack.c.l.b16 %v276
  %v319 = vunpack.c.l.b16 %v277
  %v320 = vunpack.c.l.b16 %v278
  %v321 = vunpack.c.l.b16 %v279
  %v322 = vunpack.c.l.b16 %v280
  %v323 = vpack.c.b16 %v308, %v307
  %v324 = vpack.c.b16 %v310, %v309
  %v325 = vpack.c.b16 %v312, %v311
  %v326 = vpack.c.b16 %v314, %v313
  %v327 = vpack.c.b16 %v316, %v315
  %v328 = vpack.c.b16 %v318, %v317
  %v329 = vpack.c.b16 %v320, %v319
  %v330 = vpack.c.b16 %v322, %v321
  %339 = vmatpush.bf16.msra.mxu0 %v330
  %340 = vmatpush.bf16.msra.mxu0 %v329
  %341 = vmatpush.bf16.msra.mxu0 %v328
  %342 = vmatpush.bf16.msra.mxu0 %v327
  %343 = vmatpush.bf16.msra.mxu0 %v326
  %344 = vmatpush.bf16.msra.mxu0 %v325
  %345 = vmatpush.bf16.msra.mxu0 %v324
  %346 = vmatpush.bf16.msra.mxu0 %v323
  %347 = vmatmul.bf16.gmra.mxu0 %v289
  %v348 = vpop.f32.mrf.mxu0
  %v349 = vadd.f32 %v283, %v348
  %v350 = vpop.f32.mrf.mxu0
  %v351 = vadd.f32 %v283, %v350
  %352 = vdwg.mxu0
  %s353 = sadd.s32 0, 0
  %s354 = smul.u32 %s353, 128
  %v355 = vlaneseq
  %v356 = vand.u32 %v355, 127
  %v357 = vstv %s354
  %v358 = vadd.s32 %v357, %v356
  %v359 = vld [vmem:[#allocation4] sm:$0xff]
  %v360 = vld [vmem:[#allocation4 + $0x8] sm:$0xff]
  %v361 = vld [vmem:[%s4] sm:$0xff]
  %v362 = vld [vmem:[%s4 + $0x8] sm:$0xff]
  %363 = vset.pattern.permute.xlu0 0
  %364 = vperm.xlu0 %363, %v361
  %v365 = vpop.permute.xlu0 %364
  %366 = vset.pattern.permute.xlu0 0
  %367 = vperm.xlu0 %366, %v362
  %v368 = vpop.permute.xlu0 %367
  %vm369 = vcmp.eq.s32.totalorder %v358, %v365
  %vm370 = vcmp.eq.s32.totalorder %v358, %v368
  %v371 = vsel %vm369, %v349, 0.0
  %v372 = vsel %vm370, %v351, 0.0
  %373 = vadd.xlane.f32.xlu0 %v371
  %v374 = vpop.xlane.xlu0 %373
  %375 = vadd.xlane.f32.xlu0 %v372
  %v376 = vpop.xlane.xlu0 %375
  %v377 = vadd.f32 %v359, %v374
  %v378 = vadd.f32 %v360, %v376
  %vm379 = vcmask 7168
  %380 = vst.msk [vmem:[#allocation4] sm:$0xff] %vm379, %v377
  %381 = vst.msk [vmem:[#allocation4 + $0x8] sm:$0xff] %vm379, %v378
  %s382 = sadd.s32 %s354, 128
  %p383 = scmp.le.s32.totalorder %s382, 16
  // Predicated region
  $region34: #{_pie_v2_loss_prepped.1} parent=0 // pred_check
    %p384 = pneg %p383
  $region35: #{_pie_v2_loss_prepped.1} parent=0 // pred_check_branch
    %386 = sbr.rel (%p384) target = $region37
  $region36: #{_pie_v2_loss_prepped.1} parent=0 // pred_region
    %v387 = vld [vmem:[#allocation2] sm:$0xff]
    %v388 = vld [vmem:[#allocation2 + $0x8] sm:$0xff]
    %389 = vmax.xlane.f32.xlu0 %v349
    %v390 = vpop.xlane.xlu0 %389
    %391 = vmax.xlane.f32.xlu0 %v351
    %v392 = vpop.xlane.xlu0 %391
    %v393 = vmax.f32 %v387, %v390
    %v394 = vmax.f32 %v388, %v392
    %v395 = vsub.f32 %v387, %v393
    %v396 = vsub.f32 %v388, %v394
    %v397 = vmul.f32 %v395, 1.442695
    %v398 = vpow.pop %v397
    %v399 = vmul.f32 %v396, 1.442695
    %v400 = vpow.pop %v399
    %v401 = vld [vmem:[#allocation3] sm:$0xff]
    %v402 = vld [vmem:[#allocation3 + $0x8] sm:$0xff]
    %v403 = vmul.f32 %v398, %v401
    %v404 = vmul.f32 %v400, %v402
    %406 = vset.pattern.permute.xlu0 0
    %407 = vperm.xlu0 %406, %v393
    %v408 = vpop.permute.xlu0 %407
    %411 = vset.pattern.permute.xlu0 0
    %412 = vperm.xlu0 %411, %v394
    %v413 = vpop.permute.xlu0 %412
    %v415 = vsub.f32 %v349, %v408
    %v416 = vsub.f32 %v351, %v413
    %v417 = vmul.f32 %v415, 1.442695
    %v418 = vpow.pop %v417
    %v419 = vmul.f32 %v416, 1.442695
    %v420 = vpow.pop %v419
    %421 = vadd.xlane.f32.xlu0 %v418
    %v422 = vpop.xlane.xlu0 %421
    %423 = vadd.xlane.f32.xlu0 %v420
    %v424 = vpop.xlane.xlu0 %423
    %v425 = vadd.f32 %v403, %v422
    %v426 = vadd.f32 %v404, %v424
    %427 = vst.msk [vmem:[#allocation3] sm:$0xff] %vm379, %v425
    %428 = vst.msk [vmem:[#allocation3 + $0x8] sm:$0xff] %vm379, %v426
    %429 = vst.msk [vmem:[#allocation2] sm:$0xff] %vm379, %v393
    %430 = vst.msk [vmem:[#allocation2 + $0x8] sm:$0xff] %vm379, %v394
  $region37: #{_pie_v2_loss_prepped.1} parent=0 // pred_fallthru
    _
  %p431 = scmp.gt.s32.totalorder %s382, 16
  // Predicated region
  $region38: #{_pie_v2_loss_prepped.1} parent=0 // pred_check
    %p432 = pneg %p431
  $region39: #{_pie_v2_loss_prepped.1} parent=0 // pred_check_branch
    %434 = sbr.rel (%p432) target = $region41
  $region40: #{_pie_v2_loss_prepped.1} parent=0 // pred_region
    %vm435 = vcmp.lt.s32.totalorder %v358, 16
    %v436 = vsel %vm435, 1, 0
    %vm437 = vcmp.eq.s32.totalorder %v436, 1
    %v438 = vsel %vm437, %v349, -inf
    %v439 = vsel %vm437, %v351, -inf
    %v440 = vld [vmem:[#allocation2] sm:$0xff]
    %v441 = vld [vmem:[#allocation2 + $0x8] sm:$0xff]
    %442 = vmax.xlane.f32.xlu0 %v438
    %v443 = vpop.xlane.xlu0 %442
    %444 = vmax.xlane.f32.xlu0 %v439
    %v445 = vpop.xlane.xlu0 %444
    %v446 = vmax.f32 %v440, %v443
    %v447 = vmax.f32 %v441, %v445
    %v448 = vsub.f32 %v440, %v446
    %v449 = vsub.f32 %v441, %v447
    %v450 = vmul.f32 %v448, 1.442695
    %v451 = vpow.pop %v450
    %v452 = vmul.f32 %v449, 1.442695
    %v453 = vpow.pop %v452
    %v454 = vld [vmem:[#allocation3] sm:$0xff]
    %v455 = vld [vmem:[#allocation3 + $0x8] sm:$0xff]
    %v456 = vmul.f32 %v451, %v454
    %v457 = vmul.f32 %v453, %v455
    %459 = vset.pattern.permute.xlu0 0
    %460 = vperm.xlu0 %459, %v446
    %v461 = vpop.permute.xlu0 %460
    %464 = vset.pattern.permute.xlu0 0
    %465 = vperm.xlu0 %464, %v447
    %v466 = vpop.permute.xlu0 %465
    %v468 = vsub.f32 %v438, %v461
    %v469 = vsub.f32 %v439, %v466
    %v470 = vmul.f32 %v468, 1.442695
    %v471 = vpow.pop %v470
    %v472 = vmul.f32 %v469, 1.442695
    %v473 = vpow.pop %v472
    %474 = vadd.xlane.f32.xlu0 %v471
    %v475 = vpop.xlane.xlu0 %474
    %476 = vadd.xlane.f32.xlu0 %v473
    %v477 = vpop.xlane.xlu0 %476
    %v478 = vadd.f32 %v456, %v475
    %v479 = vadd.f32 %v457, %v477
    %480 = vst.msk [vmem:[#allocation3] sm:$0xff] %vm379, %v478
    %481 = vst.msk [vmem:[#allocation3 + $0x8] sm:$0xff] %vm379, %v479
    %482 = vst.msk [vmem:[#allocation2] sm:$0xff] %vm379, %v446
    %483 = vst.msk [vmem:[#allocation2 + $0x8] sm:$0xff] %vm379, %v447
  $region41: #{_pie_v2_loss_prepped.1} parent=0 // pred_fallthru
    _
  // Predicated region
  $region42: #{_pie_v2_loss_prepped.1} parent=0 // pred_check
    %p484 = pneg %p58
  $region43: #{_pie_v2_loss_prepped.1} parent=0 // pred_check_branch
    %486 = sbr.rel (%p484) target = $region45
  $region44: #{_pie_v2_loss_prepped.1} parent=0 // pred_region
    %v487 = vld [vmem:[#allocation2] sm:$0xff]
    %v488 = vld [vmem:[#allocation2 + $0x8] sm:$0xff]
    %489 = vst.msk [vmem:[%s6] sm:$0xff] %vm379, %v487
    %490 = vst.msk [vmem:[%s6 + $0x8] sm:$0xff] %vm379, %v488
    %v491 = vld [vmem:[#allocation3] sm:$0xff]
    %v492 = vld [vmem:[#allocation3 + $0x8] sm:$0xff]
    %493 = vst.msk [vmem:[%s7] sm:$0xff] %vm379, %v491
    %494 = vst.msk [vmem:[%s7 + $0x8] sm:$0xff] %vm379, %v492
    %v495 = vld [vmem:[#allocation4] sm:$0xff]
    %v496 = vld [vmem:[#allocation4 + $0x8] sm:$0xff]
    %497 = vst.msk [vmem:[%s8] sm:$0xff] %vm379, %v495
    %498 = vst.msk [vmem:[%s8 + $0x8] sm:$0xff] %vm379, %v496
    %v499 = vld [vmem:[#allocation5] sm:$0xff]
    %v500 = vld [vmem:[#allocation5 + $0x8] sm:$0xff]
    %501 = vst.msk [vmem:[%s9] sm:$0xff] %vm379, %v499
    %502 = vst.msk [vmem:[%s9 + $0x8] sm:$0xff] %vm379, %v500
  $region45: #{_pie_v2_loss_prepped.1} parent=0 // pred_fallthru
    _
  // Predicated region
  $region46: #{_pie_v2_loss_prepped.1} parent=0 // pred_check
    _
  $region47: #{_pie_v2_loss_prepped.1} parent=0 // pred_check_branch
    %504 = sbr.rel (0) target = $region49
  $region48: #{_pie_v2_loss_prepped.1} parent=0 // pred_region
    _
  $region49: #{_pie_v2_loss_prepped.1} parent=0 // pred_fallthru
    _
  // Predicated region
  $region50: #{_pie_v2_loss_prepped.1} parent=0 // pred_check
    _
  $region51: #{_pie_v2_loss_prepped.1} parent=0 // pred_check_branch
    %506 = sbr.rel (0) target = $region53
  $region52: #{_pie_v2_loss_prepped.1} parent=0 // pred_region
    _
  $region53: #{_pie_v2_loss_prepped.1} parent=0 // pred_fallthru
    _
  // Predicated region
  $region54: #{_pie_v2_loss_prepped.1} parent=0 // pred_check
    _
  $region55: #{_pie_v2_loss_prepped.1} parent=0 // pred_check_branch
    %508 = sbr.rel (0) target = $region57
  $region56: #{_pie_v2_loss_prepped.1} parent=0 // pred_region
    _
  $region57: #{_pie_v2_loss_prepped.1} parent=0 // pred_fallthru
    _
  // Predicated region
  $region58: #{_pie_v2_loss_prepped.1} parent=0 // pred_check
    _
  $region59: #{_pie_v2_loss_prepped.1} parent=0 // pred_check_branch
    %510 = sbr.rel (0) target = $region61
  $region60: #{_pie_v2_loss_prepped.1} parent=0 // pred_region
    _
  $region61: #{_pie_v2_loss_prepped.1} parent=0 // pred_fallthru
    _
  // Predicated region
  $region62: #{_pie_v2_loss_prepped.1} parent=0 // pred_check
    _
  $region63: #{_pie_v2_loss_prepped.1} parent=0 // pred_check_branch
    %512 = sbr.rel (0) target = $region65
  $region64: #{_pie_v2_loss_prepped.1} parent=0 // pred_region
    _
  $region65: #{_pie_v2_loss_prepped.1} parent=0 // pred_fallthru
    _
  // Predicated region
  $region66: #{_pie_v2_loss_prepped.1} parent=0 // pred_check
    _
  $region67: #{_pie_v2_loss_prepped.1} parent=0 // pred_check_branch
    %514 = sbr.rel (0) target = $region69
  $region68: #{_pie_v2_loss_prepped.1} parent=0 // pred_region
    _
  $region69: #{_pie_v2_loss_prepped.1} parent=0 // pred_fallthru
    _
  // Predicated region
  $region70: #{_pie_v2_loss_prepped.1} parent=0 // pred_check
    _
  $region71: #{_pie_v2_loss_prepped.1} parent=0 // pred_check_branch
    %516 = sbr.rel (0) target = $region73
  $region72: #{_pie_v2_loss_prepped.1} parent=0 // pred_region
    _
  $region73: #{_pie_v2_loss_prepped.1} parent=0 // pred_fallthru
    _
  // Predicated region
  $region74: #{_pie_v2_loss_prepped.1} parent=0 // pred_check
    _
  $region75: #{_pie_v2_loss_prepped.1} parent=0 // pred_check_branch
    %518 = sbr.rel (0) target = $region77
  $region76: #{_pie_v2_loss_prepped.1} parent=0 // pred_region
    _
  $region77: #{_pie_v2_loss_prepped.1} parent=0 // pred_fallthru
    _

</llo_original>
